<compile_context>
chip_gen: v6e
topology: v6e:2x2x1
jax: 0.10.0
libtpu: 0.0.40
codegen_flags: <defaults>
</compile_context>

<pallas_src>
import math
import functools

import jax
import jax.numpy as jnp
from jax.experimental import pallas as pl
from jax.experimental.pallas import tpu as pltpu


def _round_up(x: int, m: int) -> int:
    return ((x + m - 1) // m) * m


def _round_down(x: int, m: int) -> int:
    return (x // m) * m


def _phuber_kernel(logits_ref, labels_ref, col_ref, partial_ref, *, tau: float,
                   n_rows: int, tn: int):
    i = pl.program_id(0)

    logits = logits_ref[...].astype(jnp.float32)    # (TN, C) upcast per-tile
    labels = labels_ref[...]                        # (TN, 1) int32
    col = col_ref[...]                              # (1, C)  int32 (precomputed)
    tn_b, _ = logits.shape

    # One-hot gather of the label column via a broadcasted compare against the
    # precomputed column-index row (no dynamic vector gather on TPU, no
    # per-step iota materialization).
    is_label = col == labels                        # (TN, C) bool

    # Numerically-stable log-softmax at the label column.
    m = jnp.max(logits, axis=1, keepdims=True)                      # (TN, 1)
    ex = jnp.exp(logits - m)                                        # (TN, C)
    denom = jnp.sum(ex, axis=1, keepdims=True)                      # (TN, 1)
    logit_y = jnp.sum(jnp.where(is_label, logits, 0.0), axis=1, keepdims=True)

    log_p = logit_y - m - jnp.log(denom)            # (TN, 1) log softmax at label
    p = jnp.exp(log_p)                              # (TN, 1) cheap EUP exp

    prob_thresh = 1.0 / tau
    boundary = math.log(tau) + 1.0
    loss = jnp.where(p <= prob_thresh, -tau * p + boundary, -log_p)  # (TN, 1)

    # Mask rows beyond the true batch size (edge-tile padding) BEFORE reducing.
    row = i * tn + jax.lax.broadcasted_iota(jnp.int32, (tn_b, 1), 0)
    loss = jnp.where(row < n_rows, loss, 0.0)

    # Lane/sublane-dense partial-sum block -> unmasked vst, parallel-friendly.
    partial_ref[...] = jnp.broadcast_to(jnp.sum(loss), (1, 8, 128))


def phuber_cross_entropy(logits: jax.Array, label_ids: jax.Array,
                         tau: float = 10.0,
                         block_rows: int | None = None,
                         vmem_budget_bytes: int = 12 * 1024 * 1024) -> jax.Array:
    """Pallas-backed PHuber cross entropy. logits: [N, C], label_ids: [N]."""
    n, c = logits.shape
    itemsize = jnp.dtype(logits.dtype).itemsize

    # ---- Row-tile (TN) selection --------------------------------------------
    if block_rows is not None:
        # Explicit override (mostly for tests). Partial tiles must be 8-aligned.
        tn = max(1, min(int(block_rows), n))
        if tn < n:
            tn = max(8, _round_down(tn, 8))
    else:
        # Derive TN from a per-buffer VMEM byte budget: tile bytes scale with
        # C, so a fixed row count either blows VMEM (huge C) or is overhead
        # dominated (tiny C). Cap at 2048 rows (diminishing returns beyond).
        bytes_per_row = max(1, c * itemsize)
        tn = _round_down(max(8, vmem_budget_bytes // bytes_per_row), 8)
        tn = max(8, min(tn, 2048))
        if tn >= n:
            if n > 8:
                # Whole batch would fit in one tile: split into >= 2 blocks so
                # the "parallel" row axis can shard across both v7x TCs.
                tn = max(8, _round_up(pl.cdiv(n, 2), 8))
                if tn >= n:
                    tn = n
            else:
                tn = n

    num_blocks = pl.cdiv(n, tn)

    labels2d = label_ids.astype(jnp.int32).reshape(n, 1)
    col_ids = jnp.arange(c, dtype=jnp.int32).reshape(1, c)

    # ---- Explicit scoped-VMEM limit (double-buffered, padded tiles + slack) --
    logits_tile = _round_up(tn, 8) * _round_up(c, 128) * itemsize
    labels_tile = _round_up(tn, 8) * 128 * 4          # (TN, 1) pads to (TN, 128)
    col_tile = 8 * _round_up(c, 128) * 4               # (1, C)  pads to (8, C)
    out_tile = 8 * 128 * 4
    vmem_limit = int(1.25 * (2 * (logits_tile + labels_tile + col_tile)
                             + 2 * out_tile))
    vmem_limit = min(max(vmem_limit, 4 << 20), 64 << 20)

    partials = pl.pallas_call(
        functools.partial(_phuber_kernel, tau=float(tau), n_rows=n, tn=tn),
        out_shape=jax.ShapeDtypeStruct((num_blocks, 8, 128), jnp.float32),
        grid=(num_blocks,),
        in_specs=[
            pl.BlockSpec((tn, c), lambda i: (i, 0)),
            pl.BlockSpec((tn, 1), lambda i: (i, 0)),
            pl.BlockSpec((1, c), lambda i: (0, 0)),
        ],
        out_specs=pl.BlockSpec((1, 8, 128), lambda i: (i, 0, 0)),
        compiler_params=pltpu.CompilerParams(
            dimension_semantics=("parallel",),
            vmem_limit_bytes=vmem_limit),
    )(logits, labels2d, col_ids)

    # Tiny final reduction in plain JAX; multiply by a precomputed 1/N.
    return jnp.sum(partials[:, 0, 0]) * (1.0 / n)


def _reference(logits, label_ids, tau=10.0):
    p = jax.nn.softmax(logits.astype(jnp.float32), axis=1)
    p = p[jnp.arange(logits.shape[0]), label_ids]
    loss = jnp.where(p <= 1.0 / tau, -tau * p + (math.log(tau) + 1.0),
                     -jnp.log(p))
    return jnp.mean(loss)


if __name__ == "__main__":
    key = jax.random.PRNGKey(0)
    k1, k2, k3, k4 = jax.random.split(key, 4)

    # Case 1: small single-block batch (auto-sized TN).
    batch, num_classes = 8, 32
    logits = 3.0 * jax.random.normal(k1, (batch, num_classes), jnp.float32)
    label_ids = jax.random.randint(k2, (batch,), 0, num_classes, jnp.int32)

    out = phuber_cross_entropy(logits, label_ids, tau=10.0)
    out = jax.block_until_ready(out)
    ref = _reference(logits, label_ids, tau=10.0)
    assert jnp.allclose(out, ref, rtol=1e-5, atol=1e-5), (out, ref)

    # Case 2: multi-block grid with a ragged edge tile via explicit override.
    batch2, classes2 = 40, 128
    logits2 = 3.0 * jax.random.normal(k3, (batch2, classes2), jnp.float32)
    label_ids2 = jax.random.randint(k4, (batch2,), 0, classes2, jnp.int32)

    out2 = phuber_cross_entropy(logits2, label_ids2, tau=10.0, block_rows=16)
    out2 = jax.block_until_ready(out2)
    ref2 = _reference(logits2, label_ids2, tau=10.0)
    assert jnp.allclose(out2, ref2, rtol=1e-5, atol=1e-5), (out2, ref2)

    # Case 3: same data, auto-sized TN (exercises the >=2-block split + the
    # masked ragged edge through the auto-sizing path).
    out3 = phuber_cross_entropy(logits2, label_ids2, tau=10.0)
    out3 = jax.block_until_ready(out3)
    assert jnp.allclose(out3, ref2, rtol=1e-5, atol=1e-5), (out3, ref2)

    print("KERNEL_OK")
</pallas_src>

<mosaic_0001>
module attributes {stable_mosaic.version = 11 : i64} {
  func.func @_phuber_kernel(%arg0: i32, %arg1: memref<8x32xf32, #tpu.memory_space<vmem>>, %arg2: memref<8x1xi32, #tpu.memory_space<vmem>>, %arg3: memref<1x32xi32, #tpu.memory_space<vmem>>, %arg4: memref<1x8x128xf32, #tpu.memory_space<vmem>>) attributes {dimension_semantics = [#tpu.dimension_semantics<parallel>], iteration_bounds = array<i64: 1>, scalar_prefetch = 0 : i64, scratch_operands = 0 : i64, tpu.core_type = #tpu.core_type<tc>, window_params = [{transform_indices = @transform_0, window_bounds = array<i64: 8, 32>}, {transform_indices = @transform_1, window_bounds = array<i64: 8, 1>}, {pipeline_mode = #tpu.pipeline_mode<synchronous>, transform_indices = @transform_2, window_bounds = array<i64: 1, 32>}, {transform_indices = @transform_3, window_bounds = array<i64: 1, 8, 128>}]} {
    %c0 = arith.constant 0 : index
    %c0_0 = arith.constant 0 : index
    %0 = vector.load %arg1[%c0, %c0_0] : memref<8x32xf32, #tpu.memory_space<vmem>>, vector<8x32xf32>
    %c0_1 = arith.constant 0 : index
    %c0_2 = arith.constant 0 : index
    %1 = vector.load %arg2[%c0_1, %c0_2] : memref<8x1xi32, #tpu.memory_space<vmem>>, vector<8x1xi32>
    %c0_3 = arith.constant 0 : index
    %c0_4 = arith.constant 0 : index
    %2 = vector.load %arg3[%c0_3, %c0_4] : memref<1x32xi32, #tpu.memory_space<vmem>>, vector<1x32xi32>
    %3 = vector.broadcast %2 : vector<1x32xi32> to vector<8x32xi32>
    %4 = vector.broadcast %1 : vector<8x1xi32> to vector<8x32xi32>
    %5 = arith.cmpi eq, %3, %4 : vector<8x32xi32>
    %cst = arith.constant dense<0xFF800000> : vector<8xf32>
    %6 = vector.multi_reduction <maximumf>, %0, %cst [1] : vector<8x32xf32> to vector<8xf32>
    %7 = vector.shape_cast %6 : vector<8xf32> to vector<8x1xf32>
    %8 = vector.broadcast %7 : vector<8x1xf32> to vector<8x32xf32>
    %9 = arith.subf %0, %8 : vector<8x32xf32>
    %10 = math.exp %9 : vector<8x32xf32>
    %cst_5 = arith.constant dense<0.000000e+00> : vector<8xf32>
    %11 = vector.multi_reduction <add>, %10, %cst_5 [1] : vector<8x32xf32> to vector<8xf32>
    %12 = vector.shape_cast %11 : vector<8xf32> to vector<8x1xf32>
    %cst_6 = arith.constant 0.000000e+00 : f32
    %13 = vector.broadcast %cst_6 : f32 to vector<8x32xf32>
    %14 = arith.select %5, %0, %13 : vector<8x32xi1>, vector<8x32xf32>
    %cst_7 = arith.constant dense<0.000000e+00> : vector<8xf32>
    %15 = vector.multi_reduction <add>, %14, %cst_7 [1] : vector<8x32xf32> to vector<8xf32>
    %16 = vector.shape_cast %15 : vector<8xf32> to vector<8x1xf32>
    %17 = arith.subf %16, %7 : vector<8x1xf32>
    %18 = math.log %12 : vector<8x1xf32>
    %19 = arith.subf %17, %18 : vector<8x1xf32>
    %20 = math.exp %19 : vector<8x1xf32>
    %cst_8 = arith.constant 1.000000e-01 : f32
    %21 = vector.broadcast %cst_8 : f32 to vector<8x1xf32>
    %22 = arith.cmpf ole, %20, %21 : vector<8x1xf32>
    %cst_9 = arith.constant -1.000000e+01 : f32
    %23 = vector.broadcast %cst_9 : f32 to vector<8x1xf32>
    %24 = arith.mulf %23, %20 : vector<8x1xf32>
    %cst_10 = arith.constant 3.30258512 : f32
    %25 = vector.broadcast %cst_10 : f32 to vector<8x1xf32>
    %26 = arith.addf %24, %25 : vector<8x1xf32>
    %cst_11 = arith.constant 0.000000e+00 : f32
    %27 = vector.broadcast %cst_11 : f32 to vector<8x1xf32>
    %28 = arith.subf %27, %19 : vector<8x1xf32>
    %29 = arith.select %22, %26, %28 : vector<8x1xi1>, vector<8x1xf32>
    %c8_i32 = arith.constant 8 : i32
    %30 = arith.muli %arg0, %c8_i32 : i32
    %31 = tpu.iota {dimensions = array<i32: 0>} : vector<8x1xi32>
    %32 = vector.broadcast %30 : i32 to vector<8x1xi32>
    %33 = arith.addi %32, %31 : vector<8x1xi32>
    %c8_i32_12 = arith.constant 8 : i32
    %34 = vector.broadcast %c8_i32_12 : i32 to vector<8x1xi32>
    %35 = arith.cmpi slt, %33, %34 : vector<8x1xi32>
    %cst_13 = arith.constant 0.000000e+00 : f32
    %36 = vector.broadcast %cst_13 : f32 to vector<8x1xf32>
    %37 = arith.select %35, %29, %36 : vector<8x1xi1>, vector<8x1xf32>
    %38 = vector.shape_cast %37 : vector<8x1xf32> to vector<1x8x1xf32>
    %cst_14 = arith.constant dense<0.000000e+00> : vector<1xf32>
    %39 = vector.multi_reduction <add>, %38, %cst_14 [1, 2] : vector<1x8x1xf32> to vector<1xf32>
    %40 = vector.shape_cast %39 : vector<1xf32> to vector<1x1x1xf32>
    %41 = vector.extract %40[0, 0, 0] : f32 from vector<1x1x1xf32>
    %42 = vector.broadcast %41 : f32 to vector<1x8x128xf32>
    %c0_15 = arith.constant 0 : index
    %c0_16 = arith.constant 0 : index
    %c0_17 = arith.constant 0 : index
    %43 = vector.load %arg4[%c0_15, %c0_16, %c0_17] : memref<1x8x128xf32, #tpu.memory_space<vmem>>, vector<1x8x128xf32>
    tpu.vector_store %arg4[%c0_15, %c0_16, %c0_17], %42 {strides = array<i32>} : memref<1x8x128xf32, #tpu.memory_space<vmem>>, vector<1x8x128xf32>,
    return
  }
  func.func @transform_0(%arg0: i32) -> (i32, i32) {
    %c0_i32 = arith.constant 0 : i32
    %c0_i32_0 = arith.constant 0 : i32
    return %arg0, %c0_i32 : i32, i32
  }
  func.func @transform_1(%arg0: i32) -> (i32, i32) {
    %c0_i32 = arith.constant 0 : i32
    %c0_i32_0 = arith.constant 0 : i32
    return %arg0, %c0_i32 : i32, i32
  }
  func.func @transform_2(%arg0: i32) -> (i32, i32) {
    %c0_i32 = arith.constant 0 : i32
    %c0_i32_0 = arith.constant 0 : i32
    %c0_i32_1 = arith.constant 0 : i32
    return %c0_i32, %c0_i32_0 : i32, i32
  }
  func.func @transform_3(%arg0: i32) -> (i32, i32, i32) {
    %c0_i32 = arith.constant 0 : i32
    %c0_i32_0 = arith.constant 0 : i32
    %c0_i32_1 = arith.constant 0 : i32
    return %arg0, %c0_i32, %c0_i32_0 : i32, i32, i32
  }
}

</mosaic_0001>

<llo_original>
// kernel: tpu_custom_call.1
$region0: #{tpu_custom_call.1}
  #allocation0 [shape = 'u32[]', space=smem, size = 0x4, offset = 0x4, fixed_abs, tag = 'smem constant byte address 0x4 - core index']
  #allocation1 [shape = 'u32[144,128]{1,0:T(1,128)}', space=vmem, size = 0x12000, scoped, tag = 'internal scratch']
  %s0 = inlined_call_operand.vmem [shape: f32[8,32], index: 0, kind: input, shape index: {}]
  %s1 = inlined_call_operand.vmem [shape: s32[8,1], index: 1, kind: input, shape index: {}]
  %s2 = inlined_call_operand.vmem [shape: s32[1,32], index: 2, kind: input, shape index: {}]
  %s3 = inlined_call_operand.hbm [shape: f32[1,8,128], index: 3, kind: output, shape index: {}]
  %s4 = sld [smem:[#allocation0]]
  $region22: #{tpu_custom_call.1} parent=0
    _
  %s6 = ssub.s32 1, %s4
  %s7 = scalar_select 0, %s6, %s4
  $region1: #{tpu_custom_call.1} parent=0
    #allocation2 [shape = 'u8[4096]{0}', space=vmem, size = 0x1000, scoped, tag = 'output window, operand 0, single buffered']
    #allocation3 [shape = 's32[1]{0}', space=sflag, size = 0x4, scoped, tag = 'scoped memory for tpu_custom_call.1']
    %8 = vsyncpa [#allocation3], 0
    // Predicated region
    $region2: #{tpu_custom_call.1} parent=1 // pred_check
      _
    $region3: #{tpu_custom_call.1} parent=1 // pred_check_branch
      %10 = sbr.rel (0) target = $region5
    $region4: #{tpu_custom_call.1} parent=1 // pred_region
      _
    $region5: #{tpu_custom_call.1} parent=1 // pred_fallthru
      _
    // Predicated region
    $region6: #{tpu_custom_call.1} parent=1 // pred_check
      _
    $region7: #{tpu_custom_call.1} parent=1 // pred_check_branch
      %12 = sbr.rel (0) target = $region9
    $region8: #{tpu_custom_call.1} parent=1 // pred_region
      _
    $region9: #{tpu_custom_call.1} parent=1 // pred_fallthru
      _
    // Predicated region
    $region10: #{tpu_custom_call.1} parent=1 // pred_check
      _
    $region11: #{tpu_custom_call.1} parent=1 // pred_check_branch
      %14 = sbr.rel (0) target = $region13
    $region12: #{tpu_custom_call.1} parent=1 // pred_region
      _
    $region13: #{tpu_custom_call.1} parent=1 // pred_fallthru
      _
    %v15 = vld [vmem:[%s0] sm:$0xff]
    %v16 = vld [vmem:[%s1] sm:$0xff]
    %v17 = vld [vmem:[%s2] sm:$0x1]
    %v18 = vlaneseq
    %v19 = vshrl.u32 %v18, 7
    %v20 = vsub.s32 0, %v19
    %v21 = vrot.slane %v17, %v20
    %22 = vset.pattern.permute.xlu0 0
    %23 = vperm.xlu0 %22, %v16
    %v24 = vpop.permute.xlu0 %23
    %vm25 = vcmp.eq.s32.totalorder %v21, %v24
    %vm26 = vcmask 261120
    %v27 = vsel %vm26, %v15, -inf
    %28 = vmax.xlane.f32.xlu0 %v27
    %v29 = vpop.xlane.xlu0 %28
    %v30 = vsub.f32 %v15, %v29
    %v31 = vmul.f32 %v30, 1.442695
    %v32 = vpow.pop %v31
    %v33 = vsel %vm26, %v32, 0.0
    %34 = vadd.xlane.f32.xlu0 %v33
    %v35 = vpop.xlane.xlu0 %34
    %v36 = vsel %vm25, %v15, 0.0
    %v37 = vsel %vm26, %v36, 0.0
    %38 = vadd.xlane.f32.xlu0 %v37
    %v39 = vpop.xlane.xlu0 %38
    %v40 = vsub.f32 %v39, %v29
    %v41 = vlog2.pop %v35
    %v42 = vmul.f32 %v41, 0.6931472
    %v43 = vsub.f32 %v40, %v42
    %v44 = vmul.f32 %v43, 1.442695
    %v45 = vpow.pop %v44
    %vm46 = vcmp.le.f32.partialorder %v45, 0.1
    %v47 = vmul.f32 %v45, -10.0
    %v48 = vadd.f32 %v47, 3.3025851
    %v49 = vsub.f32 0.0, %v43
    %v50 = vsel %vm46, %v48, %v49
    %s51 = smul.u32 0, 8
    %v52 = vlaneseq
    %v53 = vshrl.u32 %v52, 7
    %v54 = vstv %s51
    %v55 = vadd.s32 %v54, %v53
    %vm56 = vcmp.lt.s32.totalorder %v55, 8
    %v57 = vsel %vm56, %v50, 0.0
    %vm58 = vcmask 7168
    %v59 = vsel %vm58, %v57, 0.0
    %60 = vadd.xlane.f32.xlu0 %v59
    %v61 = vpop.xlane.xlu0 %60
    %v62 = vrot.slane %v61, 4
    %v63 = vadd.f32 %v61, %v62
    %v64 = vrot.slane %v63, 2
    %v65 = vadd.f32 %v63, %v64
    %v66 = vrot.slane %v65, 1
    %v67 = vadd.f32 %v65, %v66
    %s68 = vtos %v67
    %v69 = vstv %s68
    %70 = vst [vmem:[#allocation2] sm:$0xff] %v69
    // Predicated region
    $region14: #{tpu_custom_call.1} parent=1 // pred_check
      _
    $region15: #{tpu_custom_call.1} parent=1 // pred_check_branch
      %72 = sbr.rel (0) target = $region17
    $region16: #{tpu_custom_call.1} parent=1 // pred_region
      %s74 = ssub.s32 128, 128
      %75 = vsyncadd [#allocation3], %s74
      %s77 = sshll.u32 [#allocation2], 4
      %s78 = int_to_ptr.vmem [resolvable:$true] %s77
      %80 = dma.vmem_to_hbm [thread:$0]  %s78, 128, %s3, [#allocation3]
    $region17: #{tpu_custom_call.1} parent=1 // pred_fallthru
      _
    // Predicated region
    $region18: #{tpu_custom_call.1} parent=1 // pred_check
      _
    $region19: #{tpu_custom_call.1} parent=1 // pred_check_branch
      %82 = sbr.rel (0) target = $region21
    $region20: #{tpu_custom_call.1} parent=1 // pred_region
      %83 = dma.done [#allocation3], 128
    $region21: #{tpu_custom_call.1} parent=1 // pred_fallthru
      _
    %84 = vsyncpa [#allocation3], 1

</llo_original>
